<compile_context>
chip_gen: v6e
topology: v6e:2x2x1
jax: 0.10.0
libtpu: 0.0.40
codegen_flags: <defaults>
</compile_context>

<pallas_src>
import functools
import math

import jax
import jax.numpy as jnp
from jax import lax
from jax.experimental import pallas as pl
from jax.experimental.pallas import tpu as pltpu


_NEG_INF = -1e30           # finite mask value (causal rows always keep >=1 key)
_GELU_TANH_APPROX = False  # set True on v5e: tanh GELU runs on the EUP instead of
                           # a long f32 erf polynomial on the VPU

_VMEM_LIMIT = None
_SINGLE_BUFFER_OK = None


# --------------------------------------------------------------------------
# small host-side helpers
# --------------------------------------------------------------------------
def _vmem_limit_bytes():
    """Generation-aware scoped-VMEM limit: ~80% of physical (compiler headroom).
    ~51 MiB on v7x (64 MiB physical), ~102 MiB on v5e/v6e (128 MiB physical)."""
    global _VMEM_LIMIT
    if _VMEM_LIMIT is None:
        cap = 128 * 1024 * 1024
        try:
            cap = int(getattr(pltpu.get_tpu_info(), "vmem_capacity_bytes", cap))
        except Exception:
            pass
        _VMEM_LIMIT = min(int(cap * 0.8), 112 * 1024 * 1024)
    return _VMEM_LIMIT


def _single_buffer_ok():
    """Probe once whether pipeline_mode=pl.Buffered(1) lowers on this JAX/Mosaic;
    fall back to default double-buffering if not (correctness unaffected)."""
    global _SINGLE_BUFFER_OK
    if _SINGLE_BUFFER_OK is None:
        try:
            def _k(x_ref, w_ref, o_ref):
                o_ref[...] = x_ref[...] + w_ref[...]

            out = pl.pallas_call(
                _k,
                out_shape=jax.ShapeDtypeStruct((8, 128), jnp.float32),
                grid=(2,),
                in_specs=[pl.BlockSpec((8, 128), lambda i: (0, 0)),
                          pl.BlockSpec((8, 128), lambda i: (0, 0),
                                       pipeline_mode=pl.Buffered(1))],
                out_specs=pl.BlockSpec((8, 128), lambda i: (0, 0)),
            )(jnp.zeros((8, 128), jnp.float32), jnp.ones((8, 128), jnp.float32))
            jax.block_until_ready(out)
            _SINGLE_BUFFER_OK = True
        except Exception:
            _SINGLE_BUFFER_OK = False
    return _SINGLE_BUFFER_OK


def _const_spec(shape):
    """Spec for grid-invariant blocks (weights/biases): constant index_map and
    single-buffered when supported -> halves their VMEM footprint (key on v7x)."""
    n = len(shape)
    imap = lambda *_, _n=n: (0,) * _n
    if _single_buffer_ok():
        return pl.BlockSpec(shape, imap, pipeline_mode=pl.Buffered(1))
    return pl.BlockSpec(shape, imap)


def _pick_tile(n, target, mult):
    """Largest tile <= target that divides n and is a multiple of `mult`
    (falls back to the full dim, which is always a legal block shape)."""
    if n <= target:
        return n
    t = (target // mult) * mult
    while t >= mult:
        if n % t == 0:
            return t
        t -= mult
    return n


# --------------------------------------------------------------------------
# in-kernel helpers
# --------------------------------------------------------------------------
def _layernorm(h, w, b, eps=1e-5):
    mu = jnp.mean(h, axis=-1, keepdims=True)
    var = jnp.mean((h - mu) ** 2, axis=-1, keepdims=True)
    return (h - mu) * lax.rsqrt(var + eps) * w + b


def _gelu(x):
    if _GELU_TANH_APPROX:
        return jax.nn.gelu(x, approximate=True)      # EUP tanh path (v5e-friendly)
    # nn.GELU() default (approximate='none') -> exact erf form, kept in f32.
    return 0.5 * x * (1.0 + lax.erf(x * (1.0 / math.sqrt(2.0))))


# --------------------------------------------------------------------------
# kernel A: LN1 + fused QKV projection, heads split once to (H, T, hs)
# --------------------------------------------------------------------------
def _qkv_kernel(x_ref, ln1w, ln1b, wkqv, bkqv, q_ref, k_ref, v_ref,
                *, n_heads, scale):
    x = x_ref[0]                                       # (TT, C) f32
    tt, C = x.shape
    hs = C // n_heads
    h = _layernorm(x, ln1w[0], ln1b[0]).astype(jnp.bfloat16)
    kqv = jnp.dot(h, wkqv[...], preferred_element_type=jnp.float32) + bkqv[0]
    # PyTorch split order: k, q, v
    k = kqv[:, 0 * C:1 * C]
    q = kqv[:, 1 * C:2 * C] * scale                    # softmax scale folded into q
    v = kqv[:, 2 * C:3 * C]

    def to_heads(t):
        # head split + (T,H,hs)->(H,T,hs) repack happens ONCE per layer here,
        # so the attention kernel never re-packs K/V per query tile.
        return t.reshape(tt, n_heads, hs).transpose(1, 0, 2).astype(jnp.bfloat16)

    q_ref[0] = to_heads(q)
    k_ref[0] = to_heads(k)
    v_ref[0] = to_heads(v)


# --------------------------------------------------------------------------
# kernel B: flash attention (online softmax over KV tiles) + proj + residual
#           + LN2 + MLP + residual
# --------------------------------------------------------------------------
def _attn_mlp_kernel(x_ref, q_ref, k_ref, v_ref,
                     wproj, bproj, ln2w, ln2b, w1, b1, w2, b2,
                     o_ref, *, tkv):
    xq = x_ref[0]                                      # (Tq, C) f32 residual
    tq, C = xq.shape
    q = q_ref[0]                                       # (H, Tq, hs) bf16, pre-scaled
    H, _, hs = q.shape
    qi = pl.program_id(1)

    # causal mask built in-kernel from iota (no (T,T) bias array streamed from HBM)
    q_pos = qi * tq + lax.broadcasted_iota(jnp.int32, (tq, tkv), 0)

    m0 = jnp.full((H, tq, 1), _NEG_INF, jnp.float32)
    l0 = jnp.zeros((H, tq, 1), jnp.float32)
    a0 = jnp.zeros((H, tq, hs), jnp.float32)

    def kv_step(j, carry):
        m, l, acc = carry
        off = pl.multiple_of(j * tkv, tkv)
        kt = k_ref[0, :, pl.ds(off, tkv), :]           # (H, tkv, hs) bf16
        vt = v_ref[0, :, pl.ds(off, tkv), :]
        s = jnp.einsum('htd,hsd->hts', q, kt,
                       preferred_element_type=jnp.float32)       # (H, Tq, tkv)
        kv_pos = off + lax.broadcasted_iota(jnp.int32, (tq, tkv), 1)
        s = jnp.where((kv_pos <= q_pos)[None, :, :], s, _NEG_INF)
        m_new = jnp.maximum(m, jnp.max(s, axis=-1, keepdims=True))
        alpha = jnp.exp(m - m_new)
        p = jnp.exp(s - m_new)
        l_new = alpha * l + jnp.sum(p, axis=-1, keepdims=True)
        pv = jnp.einsum('hts,hsd->htd', p.astype(jnp.bfloat16), vt,
                        preferred_element_type=jnp.float32)      # (H, Tq, hs)
        return m_new, l_new, alpha * acc + pv

    # causal: only KV tiles 0..qi are live for this query tile (dynamic trip count)
    _, l, acc = lax.fori_loop(0, qi + 1, kv_step, (m0, l0, a0))

    # deferred softmax normalization: scale the (H,Tq,hs) output once instead of
    # the (H,Tq,Tkv) probabilities at every KV step.
    acc = acc * pl.reciprocal(l, approx=True)

    # head merge + output projection as one (Tq,C)x(C,C) MXU matmul (K=C gives
    # better MXU fill than per-head hs-wide contractions).
    y = acc.transpose(1, 0, 2).reshape(tq, C)
    y = jnp.dot(y.astype(jnp.bfloat16), wproj[...],
                preferred_element_type=jnp.float32) + bproj[0]
    x = xq + y

    # --- MLP branch ---
    h2 = _layernorm(x, ln2w[0], ln2b[0]).astype(jnp.bfloat16)
    a = jnp.dot(h2, w1[...], preferred_element_type=jnp.float32) + b1[0]
    a = _gelu(a)
    m2 = jnp.dot(a.astype(jnp.bfloat16), w2[...],
                 preferred_element_type=jnp.float32) + b2[0]

    o_ref[0] = (x + m2).astype(o_ref.dtype)


def transformer_block(x, p, *, n_heads):
    B, T, C = x.shape
    hs = C // n_heads
    tq = _pick_tile(T, 256, 16)          # query tile (also the KV tile size)
    nq = T // tq
    vmem = _vmem_limit_bytes()
    scale = 1.0 / math.sqrt(hs)

    # ---- kernel A: LN1 + QKV, heads pre-split ----
    qkv_w = (p['ln1_w'], p['ln1_b'], p['w_kqv'], p['b_kqv'])
    qkv_shape = jax.ShapeDtypeStruct((B, n_heads, T, hs), jnp.bfloat16)
    hqkv_spec = pl.BlockSpec((1, n_heads, tq, hs), lambda b, i: (b, 0, i, 0))
    q, k, v = pl.pallas_call(
        functools.partial(_qkv_kernel, n_heads=n_heads, scale=scale),
        out_shape=(qkv_shape, qkv_shape, qkv_shape),
        grid=(B, nq),
        in_specs=[pl.BlockSpec((1, tq, C), lambda b, i: (b, i, 0))]
                 + [_const_spec(w.shape) for w in qkv_w],
        out_specs=(hqkv_spec, hqkv_spec, hqkv_spec),
        compiler_params=pltpu.CompilerParams(
            dimension_semantics=("parallel", "parallel"),
            vmem_limit_bytes=vmem),
    )(x, *qkv_w)

    # ---- kernel B: flash attention + proj + residual + MLP ----
    blk_w = (p['w_proj'], p['b_proj'], p['ln2_w'], p['ln2_b'],
             p['w_h1'], p['b_h1'], p['w_h2'], p['b_h2'])
    return pl.pallas_call(
        functools.partial(_attn_mlp_kernel, tkv=tq),
        out_shape=jax.ShapeDtypeStruct((B, T, C), x.dtype),
        grid=(B, nq),                    # b outer, q-tiles inner: K/V DMA'd once per b
        in_specs=[pl.BlockSpec((1, tq, C), lambda b, i: (b, i, 0)),               # residual
                  pl.BlockSpec((1, n_heads, tq, hs), lambda b, i: (b, 0, i, 0)),  # q tile
                  pl.BlockSpec((1, n_heads, T, hs), lambda b, i: (b, 0, 0, 0)),   # k (full)
                  pl.BlockSpec((1, n_heads, T, hs), lambda b, i: (b, 0, 0, 0))]   # v (full)
                 + [_const_spec(w.shape) for w in blk_w],
        out_specs=pl.BlockSpec((1, tq, C), lambda b, i: (b, i, 0)),
        compiler_params=pltpu.CompilerParams(
            dimension_semantics=("parallel", "parallel"),
            vmem_limit_bytes=vmem),
    )(x, q, k, v, *blk_w)


# --------------------------------------------------------------------------
# final LayerNorm + tied lm_head (bf16 wte, vocab-outer grid, rows flattened)
# --------------------------------------------------------------------------
def _head_kernel(x_ref, lnw, lnb, wte_ref, o_ref):
    h = _layernorm(x_ref[...], lnw[0], lnb[0]).astype(jnp.bfloat16)   # (TR, C)
    # logits = h @ wte_tile.T, expressed as contraction on C (no transpose in HBM)
    logits = lax.dot_general(h, wte_ref[...], (((1,), (1,)), ((), ())),
                             preferred_element_type=jnp.float32)       # (TR, TV)
    o_ref[...] = logits.astype(o_ref.dtype)


def final_head(x, lnf_w, lnf_b, wte_bf16):
    B, T, C = x.shape
    V = wte_bf16.shape[0]
    R = B * T
    xr = x.reshape(R, C)                 # flatten rows: wte is streamed once, not per b
    tv = _pick_tile(V, 2048, 128)
    tr = _pick_tile(R, 512, 8)
    out = pl.pallas_call(
        _head_kernel,
        out_shape=jax.ShapeDtypeStruct((R, V), jnp.float32),
        grid=(V // tv, R // tr),         # vocab OUTER: each (TV,C) wte tile read once
        in_specs=[pl.BlockSpec((tr, C), lambda vv, r: (r, 0)),
                  _const_spec(lnf_w.shape),
                  _const_spec(lnf_b.shape),
                  pl.BlockSpec((tv, C), lambda vv, r: (vv, 0))],
        out_specs=pl.BlockSpec((tr, tv), lambda vv, r: (r, vv)),
        compiler_params=pltpu.CompilerParams(
            dimension_semantics=("parallel", "parallel"),
            vmem_limit_bytes=_vmem_limit_bytes()),
    )(xr, lnf_w, lnf_b, wte_bf16)
    return out.reshape(B, T, V)


# --------------------------------------------------------------------------
# full Transformer forward
# --------------------------------------------------------------------------
def transformer_forward(idx, params, *, n_heads, block_size):
    B, T = idx.shape
    if T > block_size:
        raise ValueError("Input context length exceeds max block size")
    # glue: embedding gathers (token + positional) stay in XLA
    tok = jnp.take(params['wte'], idx, axis=0)            # (B, T, C)
    x = tok + params['wpe'][:T][None, :, :]
    for blk in params['blocks']:
        x = transformer_block(x, blk, n_heads=n_heads)
    # tied lm_head streams wte in bf16 (halves the dominant HBM read of the head)
    return final_head(x, params['lnf_w'], params['lnf_b'],
                      params['wte'].astype(jnp.bfloat16))


# --------------------------------------------------------------------------
# deterministic parameter init (synthetic — no checkpoint load)
# --------------------------------------------------------------------------
def init_params(key, *, vocab_size, block_size, n_embed, n_layers):
    C = n_embed
    std = 0.02
    keys = iter(jax.random.split(key, 2 + 4 * n_layers))
    f32, bf16 = jnp.float32, jnp.bfloat16
    params = {
        'wte': std * jax.random.normal(next(keys), (vocab_size, C), f32),
        'wpe': std * jax.random.normal(next(keys), (block_size, C), f32),
        'lnf_w': jnp.ones((1, C), f32),
        'lnf_b': jnp.zeros((1, C), f32),
        'blocks': [],
    }
    for _ in range(n_layers):
        params['blocks'].append({
            'ln1_w': jnp.ones((1, C), f32), 'ln1_b': jnp.zeros((1, C), f32),
            'w_kqv': (std * jax.random.normal(next(keys), (C, 3 * C), f32)
                      ).astype(bf16),
            'b_kqv': jnp.zeros((1, 3 * C), f32),
            'w_proj': (std * jax.random.normal(next(keys), (C, C), f32)
                       ).astype(bf16),
            'b_proj': jnp.zeros((1, C), f32),
            'ln2_w': jnp.ones((1, C), f32), 'ln2_b': jnp.zeros((1, C), f32),
            'w_h1': (std * jax.random.normal(next(keys), (C, 4 * C), f32)
                     ).astype(bf16),
            'b_h1': jnp.zeros((1, 4 * C), f32),
            'w_h2': (std * jax.random.normal(next(keys), (4 * C, C), f32)
                     ).astype(bf16),
            'b_h2': jnp.zeros((1, C), f32),
        })
    return params


if __name__ == "__main__":
    cfg = dict(vocab_size=64, block_size=16, n_embed=32, n_heads=4, n_layers=2)
    B, T = 2, 8

    key = jax.random.PRNGKey(0)
    k_idx, k_par = jax.random.split(key)
    idx = jax.random.randint(k_idx, (B, T), 0, cfg['vocab_size'], dtype=jnp.int32)
    params = init_params(k_par, vocab_size=cfg['vocab_size'],
                         block_size=cfg['block_size'],
                         n_embed=cfg['n_embed'], n_layers=cfg['n_layers'])

    logits = transformer_forward(idx, params,
                                 n_heads=cfg['n_heads'],
                                 block_size=cfg['block_size'])
    logits = jax.block_until_ready(logits)
    assert logits.shape == (B, T, cfg['vocab_size'])
    assert bool(jnp.all(jnp.isfinite(logits)))
    print("KERNEL_OK")
</pallas_src>

<mosaic_0001>
module attributes {stable_mosaic.version = 11 : i64} {
  func.func @_k(%arg0: i32, %arg1: memref<8x128xf32, #tpu.memory_space<vmem>>, %arg2: memref<8x128xf32, #tpu.memory_space<vmem>>, %arg3: memref<8x128xf32, #tpu.memory_space<vmem>>) attributes {dimension_semantics = [#tpu.dimension_semantics<arbitrary>], iteration_bounds = array<i64: 2>, scalar_prefetch = 0 : i64, scratch_operands = 0 : i64, tpu.core_type = #tpu.core_type<tc>, window_params = [{pipeline_mode = #tpu.pipeline_mode<synchronous>, transform_indices = @transform_0, window_bounds = array<i64: 8, 128>}, {pipeline_mode = #tpu.pipeline_mode<synchronous>, transform_indices = @transform_1, window_bounds = array<i64: 8, 128>}, {pipeline_mode = #tpu.pipeline_mode<synchronous>, transform_indices = @transform_2, window_bounds = array<i64: 8, 128>}]} {
    %c0 = arith.constant 0 : index
    %c0_0 = arith.constant 0 : index
    %0 = vector.load %arg1[%c0, %c0_0] : memref<8x128xf32, #tpu.memory_space<vmem>>, vector<8x128xf32>
    %c0_1 = arith.constant 0 : index
    %c0_2 = arith.constant 0 : index
    %1 = vector.load %arg2[%c0_1, %c0_2] : memref<8x128xf32, #tpu.memory_space<vmem>>, vector<8x128xf32>
    %2 = arith.addf %0, %1 : vector<8x128xf32>
    %c0_3 = arith.constant 0 : index
    %c0_4 = arith.constant 0 : index
    %3 = vector.load %arg3[%c0_3, %c0_4] : memref<8x128xf32, #tpu.memory_space<vmem>>, vector<8x128xf32>
    tpu.vector_store %arg3[%c0_3, %c0_4], %2 {strides = array<i32>} : memref<8x128xf32, #tpu.memory_space<vmem>>, vector<8x128xf32>,
    return
  }
  func.func @transform_0(%arg0: i32) -> (i32, i32) {
    %c0_i32 = arith.constant 0 : i32
    %c0_i32_0 = arith.constant 0 : i32
    %c0_i32_1 = arith.constant 0 : i32
    return %c0_i32, %c0_i32_0 : i32, i32
  }
  func.func @transform_1(%arg0: i32) -> (i32, i32) {
    %c0_i32 = arith.constant 0 : i32
    %c0_i32_0 = arith.constant 0 : i32
    %c0_i32_1 = arith.constant 0 : i32
    return %c0_i32, %c0_i32_0 : i32, i32
  }
  func.func @transform_2(%arg0: i32) -> (i32, i32) {
    %c0_i32 = arith.constant 0 : i32
    %c0_i32_0 = arith.constant 0 : i32
    %c0_i32_1 = arith.constant 0 : i32
    return %c0_i32, %c0_i32_0 : i32, i32
  }
}

module attributes {stable_mosaic.version = 11 : i64} {
  func.func @_qkv_kernel(%arg0: i32, %arg1: i32, %arg2: memref<1x8x32xf32, #tpu.memory_space<vmem>>, %arg3: memref<1x32xf32, #tpu.memory_space<vmem>>, %arg4: memref<1x32xf32, #tpu.memory_space<vmem>>, %arg5: memref<32x96xbf16, #tpu.memory_space<vmem>>, %arg6: memref<1x96xf32, #tpu.memory_space<vmem>>, %arg7: memref<1x4x8x8xbf16, #tpu.memory_space<vmem>>, %arg8: memref<1x4x8x8xbf16, #tpu.memory_space<vmem>>, %arg9: memref<1x4x8x8xbf16, #tpu.memory_space<vmem>>) attributes {dimension_semantics = [#tpu.dimension_semantics<parallel>, #tpu.dimension_semantics<parallel>], iteration_bounds = array<i64: 2, 1>, scalar_prefetch = 0 : i64, scratch_operands = 0 : i64, tpu.core_type = #tpu.core_type<tc>, window_params = [{transform_indices = @transform_0, window_bounds = array<i64: 1, 8, 32>}, {pipeline_mode = #tpu.pipeline_mode<synchronous>, transform_indices = @transform_1, window_bounds = array<i64: 1, 32>}, {pipeline_mode = #tpu.pipeline_mode<synchronous>, transform_indices = @transform_2, window_bounds = array<i64: 1, 32>}, {pipeline_mode = #tpu.pipeline_mode<synchronous>, transform_indices = @transform_3, window_bounds = array<i64: 32, 96>}, {pipeline_mode = #tpu.pipeline_mode<synchronous>, transform_indices = @transform_4, window_bounds = array<i64: 1, 96>}, {transform_indices = @transform_5, window_bounds = array<i64: 1, 4, 8, 8>}, {transform_indices = @transform_6, window_bounds = array<i64: 1, 4, 8, 8>}, {transform_indices = @transform_7, window_bounds = array<i64: 1, 4, 8, 8>}]} {
    %c0 = arith.constant 0 : index
    %c0_0 = arith.constant 0 : index
    %c0_1 = arith.constant 0 : index
    %0 = vector.load %arg2[%c0, %c0_0, %c0_1] : memref<1x8x32xf32, #tpu.memory_space<vmem>>, vector<1x8x32xf32>
    %1 = vector.shape_cast %0 : vector<1x8x32xf32> to vector<8x32xf32>
    %c0_2 = arith.constant 0 : index
    %c0_3 = arith.constant 0 : index
    %2 = vector.load %arg3[%c0_2, %c0_3] : memref<1x32xf32, #tpu.memory_space<vmem>>, vector<1x32xf32>
    %3 = vector.shape_cast %2 : vector<1x32xf32> to vector<32xf32>
    %c0_4 = arith.constant 0 : index
    %c0_5 = arith.constant 0 : index
    %4 = vector.load %arg4[%c0_4, %c0_5] : memref<1x32xf32, #tpu.memory_space<vmem>>, vector<1x32xf32>
    %5 = vector.shape_cast %4 : vector<1x32xf32> to vector<32xf32>
    %cst = arith.constant dense<0.000000e+00> : vector<8xf32>
    %6 = vector.multi_reduction <add>, %1, %cst [1] : vector<8x32xf32> to vector<8xf32>
    %7 = vector.shape_cast %6 : vector<8xf32> to vector<8x1xf32>
    %cst_6 = arith.constant 3.200000e+01 : f32
    %8 = vector.broadcast %cst_6 : f32 to vector<8x1xf32>
    %9 = arith.divf %7, %8 : vector<8x1xf32>
    %10 = vector.broadcast %9 : vector<8x1xf32> to vector<8x32xf32>
    %11 = arith.subf %1, %10 : vector<8x32xf32>
    %12 = arith.mulf %11, %11 : vector<8x32xf32>
    %cst_7 = arith.constant dense<0.000000e+00> : vector<8xf32>
    %13 = vector.multi_reduction <add>, %12, %cst_7 [1] : vector<8x32xf32> to vector<8xf32>
    %14 = vector.shape_cast %13 : vector<8xf32> to vector<8x1xf32>
    %cst_8 = arith.constant 3.200000e+01 : f32
    %15 = vector.broadcast %cst_8 : f32 to vector<8x1xf32>
    %16 = arith.divf %14, %15 : vector<8x1xf32>
    %17 = vector.broadcast %9 : vector<8x1xf32> to vector<8x32xf32>
    %18 = arith.subf %1, %17 : vector<8x32xf32>
    %cst_9 = arith.constant 9.99999974E-6 : f32
    %19 = vector.broadcast %cst_9 : f32 to vector<8x1xf32>
    %20 = arith.addf %16, %19 : vector<8x1xf32>
    %21 = math.rsqrt %20 : vector<8x1xf32>
    %22 = vector.broadcast %21 : vector<8x1xf32> to vector<8x32xf32>
    %23 = arith.mulf %18, %22 : vector<8x32xf32>
    %24 = vector.shape_cast %3 : vector<32xf32> to vector<1x32xf32>
    %25 = vector.broadcast %24 : vector<1x32xf32> to vector<8x32xf32>
    %26 = arith.mulf %23, %25 : vector<8x32xf32>
    %27 = vector.shape_cast %5 : vector<32xf32> to vector<1x32xf32>
    %28 = vector.broadcast %27 : vector<1x32xf32> to vector<8x32xf32>
    %29 = arith.addf %26, %28 : vector<8x32xf32>
    %30 = arith.truncf %29 : vector<8x32xf32> to vector<8x32xbf16>
    %c0_10 = arith.constant 0 : index
    %c0_11 = arith.constant 0 : index
    %31 = vector.load %arg5[%c0_10, %c0_11] : memref<32x96xbf16, #tpu.memory_space<vmem>>, vector<32x96xbf16>
    %cst_12 = arith.constant dense<0.000000e+00> : vector<8x96xf32>
    %32 = tpu.matmul %30, %31, %cst_12 {dimension_numbers = #tpu.dot_dimension_numbers<[1], [0], [0], [1], [0, 0, 1, 1], [], []>} : vector<8x32xbf16>, vector<32x96xbf16>, vector<8x96xf32> -> vector<8x96xf32>
    %c0_13 = arith.constant 0 : index
    %c0_14 = arith.constant 0 : index
    %33 = vector.load %arg6[%c0_13, %c0_14] : memref<1x96xf32, #tpu.memory_space<vmem>>, vector<1x96xf32>
    %34 = vector.shape_cast %33 : vector<1x96xf32> to vector<96xf32>
    %35 = vector.shape_cast %34 : vector<96xf32> to vector<1x96xf32>
    %36 = vector.broadcast %35 : vector<1x96xf32> to vector<8x96xf32>
    %37 = arith.addf %32, %36 : vector<8x96xf32>
    %38 = vector.extract_strided_slice %37 {offsets = [0, 0], sizes = [8, 32], strides = [1, 1]} : vector<8x96xf32> to vector<8x32xf32>
    %39 = vector.extract_strided_slice %37 {offsets = [0, 32], sizes = [8, 32], strides = [1, 1]} : vector<8x96xf32> to vector<8x32xf32>
    %cst_15 = arith.constant 0.353553385 : f32
    %40 = vector.broadcast %cst_15 : f32 to vector<8x32xf32>
    %41 = arith.mulf %39, %40 : vector<8x32xf32>
    %42 = vector.extract_strided_slice %37 {offsets = [0, 64], sizes = [8, 32], strides = [1, 1]} : vector<8x96xf32> to vector<8x32xf32>
    %43 = vector.shape_cast %41 : vector<8x32xf32> to vector<8x4x8xf32>
    %44 = tpu.transpose %43, [1, 0, 2] : vector<8x4x8xf32> -> vector<4x8x8xf32>
    %45 = arith.truncf %44 : vector<4x8x8xf32> to vector<4x8x8xbf16>
    %c0_16 = arith.constant 0 : index
    %c0_17 = arith.constant 0 : index
    %c0_18 = arith.constant 0 : index
    %c0_19 = arith.constant 0 : index
    %46 = vector.load %arg7[%c0_16, %c0_17, %c0_18, %c0_19] : memref<1x4x8x8xbf16, #tpu.memory_space<vmem>>, vector<1x4x8x8xbf16>
    %47 = vector.shape_cast %46 : vector<1x4x8x8xbf16> to vector<4x8x8xbf16>
    %48 = vector.shape_cast %45 : vector<4x8x8xbf16> to vector<1x4x8x8xbf16>
    tpu.vector_store %arg7[%c0_16, %c0_17, %c0_18, %c0_19], %48 {strides = array<i32>} : memref<1x4x8x8xbf16, #tpu.memory_space<vmem>>, vector<1x4x8x8xbf16>,
    %49 = vector.shape_cast %38 : vector<8x32xf32> to vector<8x4x8xf32>
    %50 = tpu.transpose %49, [1, 0, 2] : vector<8x4x8xf32> -> vector<4x8x8xf32>
    %51 = arith.truncf %50 : vector<4x8x8xf32> to vector<4x8x8xbf16>
    %c0_20 = arith.constant 0 : index
    %c0_21 = arith.constant 0 : index
    %c0_22 = arith.constant 0 : index
    %c0_23 = arith.constant 0 : index
    %52 = vector.load %arg8[%c0_20, %c0_21, %c0_22, %c0_23] : memref<1x4x8x8xbf16, #tpu.memory_space<vmem>>, vector<1x4x8x8xbf16>
    %53 = vector.shape_cast %52 : vector<1x4x8x8xbf16> to vector<4x8x8xbf16>
    %54 = vector.shape_cast %51 : vector<4x8x8xbf16> to vector<1x4x8x8xbf16>
    tpu.vector_store %arg8[%c0_20, %c0_21, %c0_22, %c0_23], %54 {strides = array<i32>} : memref<1x4x8x8xbf16, #tpu.memory_space<vmem>>, vector<1x4x8x8xbf16>,
    %55 = vector.shape_cast %42 : vector<8x32xf32> to vector<8x4x8xf32>
    %56 = tpu.transpose %55, [1, 0, 2] : vector<8x4x8xf32> -> vector<4x8x8xf32>
    %57 = arith.truncf %56 : vector<4x8x8xf32> to vector<4x8x8xbf16>
    %c0_24 = arith.constant 0 : index
    %c0_25 = arith.constant 0 : index
    %c0_26 = arith.constant 0 : index
    %c0_27 = arith.constant 0 : index
    %58 = vector.load %arg9[%c0_24, %c0_25, %c0_26, %c0_27] : memref<1x4x8x8xbf16, #tpu.memory_space<vmem>>, vector<1x4x8x8xbf16>
    %59 = vector.shape_cast %58 : vector<1x4x8x8xbf16> to vector<4x8x8xbf16>
    %60 = vector.shape_cast %57 : vector<4x8x8xbf16> to vector<1x4x8x8xbf16>
    tpu.vector_store %arg9[%c0_24, %c0_25, %c0_26, %c0_27], %60 {strides = array<i32>} : memref<1x4x8x8xbf16, #tpu.memory_space<vmem>>, vector<1x4x8x8xbf16>,
    return
  }
  func.func @transform_0(%arg0: i32, %arg1: i32) -> (i32, i32, i32) {
    %c0_i32 = arith.constant 0 : i32
    %c0_i32_0 = arith.constant 0 : i32
    return %arg0, %arg1, %c0_i32 : i32, i32, i32
  }
  func.func @transform_1(%arg0: i32, %arg1: i32) -> (i32, i32) {
    %c0_i32 = arith.constant 0 : i32
    %c0_i32_0 = arith.constant 0 : i32
    %c0_i32_1 = arith.constant 0 : i32
    return %c0_i32, %c0_i32_0 : i32, i32
  }
  func.func @transform_2(%arg0: i32, %arg1: i32) -> (i32, i32) {
    %c0_i32 = arith.constant 0 : i32
    %c0_i32_0 = arith.constant 0 : i32
    %c0_i32_1 = arith.constant 0 : i32
    return %c0_i32, %c0_i32_0 : i32, i32
  }
  func.func @transform_3(%arg0: i32, %arg1: i32) -> (i32, i32) {
    %c0_i32 = arith.constant 0 : i32
    %c0_i32_0 = arith.constant 0 : i32
    %c0_i32_1 = arith.constant 0 : i32
    return %c0_i32, %c0_i32_0 : i32, i32
  }
  func.func @transform_4(%arg0: i32, %arg1: i32) -> (i32, i32) {
    %c0_i32 = arith.constant 0 : i32
    %c0_i32_0 = arith.constant 0 : i32
    %c0_i32_1 = arith.constant 0 : i32
    return %c0_i32, %c0_i32_0 : i32, i32
  }
  func.func @transform_5(%arg0: i32, %arg1: i32) -> (i32, i32, i32, i32) {
    %c0_i32 = arith.constant 0 : i32
    %c0_i32_0 = arith.constant 0 : i32
    %c0_i32_1 = arith.constant 0 : i32
    return %arg0, %c0_i32, %arg1, %c0_i32_0 : i32, i32, i32, i32
  }
  func.func @transform_6(%arg0: i32, %arg1: i32) -> (i32, i32, i32, i32) {
    %c0_i32 = arith.constant 0 : i32
    %c0_i32_0 = arith.constant 0 : i32
    %c0_i32_1 = arith.constant 0 : i32
    return %arg0, %c0_i32, %arg1, %c0_i32_0 : i32, i32, i32, i32
  }
  func.func @transform_7(%arg0: i32, %arg1: i32) -> (i32, i32, i32, i32) {
    %c0_i32 = arith.constant 0 : i32
    %c0_i32_0 = arith.constant 0 : i32
    %c0_i32_1 = arith.constant 0 : i32
    return %arg0, %c0_i32, %arg1, %c0_i32_0 : i32, i32, i32, i32
  }
}

</mosaic_0001>

<llo_original>
// kernel: tpu_custom_call.1
$region0: #{tpu_custom_call.1}
  #allocation0 [shape = 'u32[]', space=smem, size = 0x4, offset = 0x4, fixed_abs, tag = 'smem constant byte address 0x4 - core index']
  #allocation1 [shape = 'u32[144,128]{1,0:T(1,128)}', space=vmem, size = 0x12000, scoped, tag = 'internal scratch']
  %s0 = inlined_call_operand.hbm [shape: f32[8,128], index: 0, kind: input, shape index: {}]
  %s1 = inlined_call_operand.hbm [shape: f32[8,128], index: 1, kind: input, shape index: {}]
  %s2 = inlined_call_operand.hbm [shape: f32[8,128], index: 2, kind: output, shape index: {}]
  %s3 = sld [smem:[#allocation0]]
  $region49: #{tpu_custom_call.1} parent=0
    _
  %s5 = ssub.s32 1, %s3
  %s6 = scalar_select 0, %s5, %s3
  $region1: #{tpu_custom_call.1} parent=0
    #allocation2 [shape = 'u8[4096]{0}', space=vmem, size = 0x1000, scoped, tag = 'input window, operand 0, single buffered']
    #allocation3 [shape = 's32[2]{0}', space=sflag, size = 0x8, scoped, tag = 'scoped memory for tpu_custom_call.1']
    #allocation4 [shape = 's32[2]{0}', space=sflag, size = 0x8, scoped, tag = 'scoped memory for tpu_custom_call.1']
    #allocation5 [shape = 'u8[4096]{0}', space=vmem, size = 0x1000, scoped, tag = 'input window, operand 1, single buffered']
    #allocation6 [shape = 's32[1]{0}', space=sflag, size = 0x4, scoped, tag = 'scoped memory for tpu_custom_call.1']
    #allocation7 [shape = 'u8[4096]{0}', space=vmem, size = 0x1000, scoped, tag = 'output window, operand 0, single buffered']
    %7 = vsyncpa [#allocation3], 0
    %8 = vsyncpa [#allocation6], 0
    %9 = vsyncpa [#allocation4], 0
    loop: start=0, step=1, limit=4
    $region2: #{tpu_custom_call.1} parent=1 // loop_pre_header
      _
    $region3: #{tpu_custom_call.1} parent=1 // loop_header
      %s11 = sphi 0, %s15
      %p12 = scmp.ge.s32.totalorder %s11, 4
      %s19 = sphi 0, %s19
      %s21 = sphi 0, %s19
      %s22 = sphi 0, %s21
      %s36 = sphi 0, %s22
      %s40 = sphi 0, %s40
      %s42 = sphi 0, %s40
      %s43 = sphi 0, %s42
      %s57 = sphi 0, %s43
      %s61 = sphi 0, %s61
      %s63 = sphi 0, %s61
      %s64 = sphi 0, %s63
      %s78 = sphi 0, %s64
    $region4: #{tpu_custom_call.1} parent=1 // loop_header_branch
      %14 = sbr.rel (%p12) target = $region8
    $region5: #{tpu_custom_call.1} parent=1 // loop_body
      %s16 = ssub.s32 %s11, 1
      %s17 = ssub.s32 %s11, 2
      %s18 = sadd.s32 %s11, 1
      %s20 = sadd.s32 %s19, 1
      %p23 = scmp.eq.s32.totalorder %s11, 1
      %p24 = scmp.ne.s32.totalorder %s19, %s21
      %p25 = scmp.eq.s32.totalorder %s11, 0
      %p26 = por %p24, %p25
      %p27 = scmp.ne.s32.totalorder %s19, %s21
      %p28 = scmp.eq.s32.totalorder %s16, 1
      %p29 = por %p27, %p28
      %p30 = scmp.ne.s32.totalorder %s21, %s22
      %p31 = scmp.eq.s32.totalorder %s16, 0
      %p32 = por %p30, %p31
      %p33 = scmp.ne.s32.totalorder %s21, %s22
      %p34 = scmp.eq.s32.totalorder %s17, 1
      %p35 = por %p33, %p34
      %p37 = scmp.ne.s32.totalorder %s22, %s36
      %p38 = scmp.eq.s32.totalorder %s17, 0
      %p39 = por %p37, %p38
      %s41 = sadd.s32 %s40, 1
      %p44 = scmp.eq.s32.totalorder %s11, 1
      %p45 = scmp.ne.s32.totalorder %s40, %s42
      %p46 = scmp.eq.s32.totalorder %s11, 0
      %p47 = por %p45, %p46
      %p48 = scmp.ne.s32.totalorder %s40, %s42
      %p49 = scmp.eq.s32.totalorder %s16, 1
      %p50 = por %p48, %p49
      %p51 = scmp.ne.s32.totalorder %s42, %s43
      %p52 = scmp.eq.s32.totalorder %s16, 0
      %p53 = por %p51, %p52
      %p54 = scmp.ne.s32.totalorder %s42, %s43
      %p55 = scmp.eq.s32.totalorder %s17, 1
      %p56 = por %p54, %p55
      %p58 = scmp.ne.s32.totalorder %s43, %s57
      %p59 = scmp.eq.s32.totalorder %s17, 0
      %p60 = por %p58, %p59
      %s62 = sadd.s32 %s61, 1
      %p65 = scmp.eq.s32.totalorder %s11, 1
      %p66 = scmp.ne.s32.totalorder %s61, %s63
      %p67 = scmp.eq.s32.totalorder %s11, 0
      %p68 = por %p66, %p67
      %p69 = scmp.ne.s32.totalorder %s61, %s63
      %p70 = scmp.eq.s32.totalorder %s16, 1
      %p71 = por %p69, %p70
      %p72 = scmp.ne.s32.totalorder %s63, %s64
      %p73 = scmp.eq.s32.totalorder %s16, 0
      %p74 = por %p72, %p73
      %p75 = scmp.ne.s32.totalorder %s63, %s64
      %p76 = scmp.eq.s32.totalorder %s17, 1
      %p77 = por %p75, %p76
      %p79 = scmp.ne.s32.totalorder %s64, %s78
      %p80 = scmp.eq.s32.totalorder %s17, 0
      %p81 = por %p79, %p80
      %p82 = scmp.le.s32.totalorder 1, %s11
      %p83 = scmp.lt.s32.totalorder %s11, 3
      %p84 = pnand %p82, %p83
      %p85 = pneg %p84
      // Predicated region
      $region9: #{tpu_custom_call.1} parent=5 // pred_check
        _
      $region10: #{tpu_custom_call.1} parent=5 // pred_check_branch
        %87 = sbr.rel (%p84) target = $region12
      $region11: #{tpu_custom_call.1} parent=5 // pred_region
        %s88 = ssub.s32 %s11, 1
        // Predicated region
        $region13: #{tpu_custom_call.1} parent=11 // pred_check
          %p89 = pneg %p32
        $region14: #{tpu_custom_call.1} parent=11 // pred_check_branch
          %91 = sbr.rel (%p89) target = $region16
        $region15: #{tpu_custom_call.1} parent=11 // pred_region
          %s93 = ssub.s32 128, 128
          %94 = vsyncadd [#allocation3], %s93
          %s96 = sshll.u32 [#allocation2], 4
          %s97 = int_to_ptr.vmem [resolvable:$true] %s96
          %99 = dma.hbm_to_vmem [thread:$0]  %s0, 128, %s97, [#allocation3]
        $region16: #{tpu_custom_call.1} parent=11 // pred_fallthru
          _
        // Predicated region
        $region17: #{tpu_custom_call.1} parent=11 // pred_check
          %p100 = pneg %p53
        $region18: #{tpu_custom_call.1} parent=11 // pred_check_branch
          %102 = sbr.rel (%p100) target = $region20
        $region19: #{tpu_custom_call.1} parent=11 // pred_region
          %s104 = ssub.s32 128, 128
          %105 = vsyncadd [#allocation6], %s104
          %s107 = sshll.u32 [#allocation5], 4
          %s108 = int_to_ptr.vmem [resolvable:$true] %s107
          %110 = dma.hbm_to_vmem [thread:$0]  %s1, 128, %s108, [#allocation6]
        $region20: #{tpu_custom_call.1} parent=11 // pred_fallthru
          _
      $region12: #{tpu_custom_call.1} parent=5 // pred_fallthru
        _
      %p111 = scmp.lt.s32.totalorder %s11, 2
      // Predicated region
      $region21: #{tpu_custom_call.1} parent=5 // pred_check
        %p112 = pneg %p111
      $region22: #{tpu_custom_call.1} parent=5 // pred_check_branch
        %114 = sbr.rel (%p112) target = $region24
      $region23: #{tpu_custom_call.1} parent=5 // pred_region
        _
      $region24: #{tpu_custom_call.1} parent=5 // pred_fallthru
        _
      %p115 = scmp.le.s32.totalorder 1, %s11
      %p116 = scmp.lt.s32.totalorder %s11, 3
      %p117 = pnand %p115, %p116
      %p118 = pneg %p117
      // Predicated region
      $region25: #{tpu_custom_call.1} parent=5 // pred_check
        _
      $region26: #{tpu_custom_call.1} parent=5 // pred_check_branch
        %120 = sbr.rel (%p117) target = $region28
      $region27: #{tpu_custom_call.1} parent=5 // pred_region
        %s121 = ssub.s32 %s11, 1
        // Predicated region
        $region29: #{tpu_custom_call.1} parent=27 // pred_check
          %p122 = pneg %p32
        $region30: #{tpu_custom_call.1} parent=27 // pred_check_branch
          %124 = sbr.rel (%p122) target = $region32
        $region31: #{tpu_custom_call.1} parent=27 // pred_region
          %125 = dma.done [#allocation3], 128
        $region32: #{tpu_custom_call.1} parent=27 // pred_fallthru
          _
        // Predicated region
        $region33: #{tpu_custom_call.1} parent=27 // pred_check
          %p126 = pneg %p53
        $region34: #{tpu_custom_call.1} parent=27 // pred_check_branch
          %128 = sbr.rel (%p126) target = $region36
        $region35: #{tpu_custom_call.1} parent=27 // pred_region
          %129 = dma.done [#allocation6], 128
        $region36: #{tpu_custom_call.1} parent=27 // pred_fallthru
          _
        %p130 = pneg %p32
        %p131 = pneg %p29
        %p132 = pneg %p53
        %p133 = pneg %p50
        %p134 = pneg %p74
        %p135 = pneg %p71
        %v136 = vld [vmem:[#allocation2] sm:$0xff]
        %v137 = vld [vmem:[#allocation5] sm:$0xff]
        %v138 = vadd.f32 %v136, %v137
        %139 = vst [vmem:[#allocation7] sm:$0xff] %v138
        // Predicated region
        $region37: #{tpu_custom_call.1} parent=27 // pred_check
          %p140 = pneg %p71
        $region38: #{tpu_custom_call.1} parent=27 // pred_check_branch
          %142 = sbr.rel (%p140) target = $region40
        $region39: #{tpu_custom_call.1} parent=27 // pred_region
          %s144 = ssub.s32 128, 128
          %145 = vsyncadd [#allocation4], %s144
          %s147 = sshll.u32 [#allocation7], 4
          %s148 = int_to_ptr.vmem [resolvable:$true] %s147
          %150 = dma.vmem_to_hbm [thread:$0]  %s148, 128, %s2, [#allocation4]
        $region40: #{tpu_custom_call.1} parent=27 // pred_fallthru
          _
        // Predicated region
        $region41: #{tpu_custom_call.1} parent=27 // pred_check
          %p151 = pneg %p71
        $region42: #{tpu_custom_call.1} parent=27 // pred_check_branch
          %153 = sbr.rel (%p151) target = $region44
        $region43: #{tpu_custom_call.1} parent=27 // pred_region
          %154 = dma.done [#allocation4], 128
        $region44: #{tpu_custom_call.1} parent=27 // pred_fallthru
          _
      $region28: #{tpu_custom_call.1} parent=5 // pred_fallthru
        _
      %p155 = scmp.le.s32.totalorder 2, %s11
      // Predicated region
      $region45: #{tpu_custom_call.1} parent=5 // pred_check
        %p156 = pneg %p155
      $region46: #{tpu_custom_call.1} parent=5 // pred_check_branch
        %158 = sbr.rel (%p156) target = $region48
      $region47: #{tpu_custom_call.1} parent=5 // pred_region
        %s159 = ssub.s32 %s11, 2
      $region48: #{tpu_custom_call.1} parent=5 // pred_fallthru
        _
    $region6: #{tpu_custom_call.1} parent=1 // loop_footer
      %s15 = sadd.s32 1, %s11
    $region7: #{tpu_custom_call.1} parent=1 // loop_footer_branch
      %10 = sbr.rel target = $region3
    $region8: #{tpu_custom_call.1} parent=1 // loop_exit
      _
    %160 = vsyncpa [#allocation3], 1
    %s161 = scalar_lea.sflag [#allocation3], 1
    %162 = vsyncpa %s161, 1
    %163 = vsyncpa [#allocation6], 1
    %164 = vsyncpa [#allocation4], 1
    %s165 = scalar_lea.sflag [#allocation4], 1
    %166 = vsyncpa %s165, 1

// kernel: tpu_custom_call.1
$region0: #{tpu_custom_call.1}
  #allocation0 [shape = 'u32[]', space=smem, size = 0x4, offset = 0x4, fixed_abs, tag = 'smem constant byte address 0x4 - core index']
  #allocation1 [shape = 'u32[144,128]{1,0:T(1,128)}', space=vmem, size = 0x12000, scoped, tag = 'internal scratch']
  %s0 = inlined_call_operand.hbm [shape: f32[2,8,32], index: 0, kind: input, shape index: {}]
  %s1 = inlined_call_operand.vmem [shape: f32[1,32], index: 1, kind: input, shape index: {}]
  %s2 = inlined_call_operand.vmem [shape: f32[1,32], index: 2, kind: input, shape index: {}]
  %s3 = inlined_call_operand.hbm [shape: bf16[32,96], index: 3, kind: input, shape index: {}]
  %s4 = inlined_call_operand.vmem [shape: f32[1,96], index: 4, kind: input, shape index: {}]
  %s5 = inlined_call_operand.hbm [shape: bf16[2,4,8,8], index: 5, kind: output, shape index: {0}]
  %s6 = inlined_call_operand.hbm [shape: bf16[2,4,8,8], index: 6, kind: output, shape index: {1}]
  %s7 = inlined_call_operand.hbm [shape: bf16[2,4,8,8], index: 7, kind: output, shape index: {2}]
  %8 = xla_tuple %s5, %s6, %s7
  %s9 = sld [smem:[#allocation0]]
  $region77: #{tpu_custom_call.1} parent=0
    _
  %s11 = ssub.s32 1, %s9
  %s12 = scalar_select 0, %s11, %s9
  $region1: #{tpu_custom_call.1} parent=0
    #allocation2 [shape = 'u8[8192]{0}', space=vmem, size = 0x2000, scoped, tag = 'input window, operand 0']
    #allocation3 [shape = 's32[2]{0}', space=sflag, size = 0x8, scoped, tag = 'scoped memory for tpu_custom_call.1']
    #allocation4 [shape = 's32[2]{0}', space=sflag, size = 0x8, scoped, tag = 'scoped memory for tpu_custom_call.1']
    #allocation5 [shape = 'u8[8192]{0}', space=vmem, size = 0x2000, scoped, tag = 'input window, operand 3, single buffered']
    #allocation6 [shape = 's32[1]{0}', space=sflag, size = 0x4, scoped, tag = 'scoped memory for tpu_custom_call.1']
    #allocation7 [shape = 'u8[16384]{0}', space=vmem, size = 0x4000, scoped, tag = 'output window, operand 0']
    #allocation8 [shape = 'u8[16384]{0}', space=vmem, size = 0x4000, scoped, tag = 'output window, operand 1']
    #allocation9 [shape = 's32[2]{0}', space=sflag, size = 0x8, scoped, tag = 'scoped memory for tpu_custom_call.1']
    #allocation10 [shape = 'u8[16384]{0}', space=vmem, size = 0x4000, scoped, tag = 'output window, operand 2']
    %13 = vsyncpa [#allocation3], 0
    %s14 = scalar_lea.sflag [#allocation3], 1
    %15 = vsyncpa %s14, 0
    %16 = vsyncpa [#allocation6], 0
    %17 = vsyncpa [#allocation4], 0
    %s18 = scalar_lea.sflag [#allocation4], 1
    %19 = vsyncpa %s18, 0
    %20 = vsyncpa [#allocation9], 0
    %s21 = scalar_lea.sflag [#allocation9], 1
    %22 = vsyncpa %s21, 0
    loop: start=0, step=1, limit=4
    $region2: #{tpu_custom_call.1} parent=1 // loop_pre_header
      _
    $region3: #{tpu_custom_call.1} parent=1 // loop_header
      %s24 = sphi 0, %s28
      %p25 = scmp.ge.s32.totalorder %s24, 4
      %s31 = sphi 0, %s43
      %s32 = sphi 0, %s39
      %s33 = sphi 0, %s31
      %s34 = sphi 0, %s32
      %s35 = sphi 0, %s33
      %s36 = sphi 0, %s34
      %s48 = sphi 0, %s50
      %s51 = sphi 0, %s48
      %s52 = sphi 0, %s51
      %s68 = sphi 0, %s52
      %s72 = sphi 0, %s72
      %s74 = sphi 0, %s72
      %s75 = sphi 0, %s74
      %s89 = sphi 0, %s75
      %s93 = sphi 0, %s93
      %s95 = sphi 0, %s93
      %s96 = sphi 0, %s95
      %s110 = sphi 0, %s96
      %s114 = sphi 0, %s114
      %s116 = sphi 0, %s114
      %s117 = sphi 0, %s116
      %s131 = sphi 0, %s117
      %s135 = sphi 0, %s135
      %s137 = sphi 0, %s135
      %s138 = sphi 0, %s137
      %s152 = sphi 0, %s138
      %s160 = sphi 0, %s162
      %s163 = sphi 0, %s160
      %s164 = sphi 0, %s163
      %s180 = sphi 0, %s164
      %s188 = sphi 0, %s190
      %s191 = sphi 0, %s188
      %s192 = sphi 0, %s191
      %s208 = sphi 0, %s192
      %s216 = sphi 0, %s218
      %s219 = sphi 0, %s216
      %s220 = sphi 0, %s219
      %s236 = sphi 0, %s220
    $region4: #{tpu_custom_call.1} parent=1 // loop_header_branch
      %27 = sbr.rel (%p25) target = $region8
    $region5: #{tpu_custom_call.1} parent=1 // loop_body
      %s29 = ssub.s32 %s24, 1
      %s30 = ssub.s32 %s24, 2
      %s37 = sadd.s32 1, %s32
      %p38 = scmp.ge.s32.totalorder %s37, 1
      %s39 = scalar_select %p38, 0, %s37
      %s40 = sadd.s32 1, %s31
      %s41 = scalar_select %p38, %s40, %s31
      %p42 = scmp.ge.s32.totalorder %s41, 2
      %s43 = scalar_select %p42, 0, %s41
      %s44 = ssub.s32 %s31, %s43
      %s45 = ssub.s32 %s32, %s39
      %s46 = sor.u32 %s44, %s45
      %p47 = scmp.eq.s32.totalorder %s46, 0
      %s49 = sadd.s32 %s48, 1
      %s50 = scalar_select %p47, %s48, %s49
      %p53 = pneg %p47
      %p54 = scmp.eq.s32.totalorder %s24, 1
      %p55 = por %p53, %p54
      %p56 = scmp.ne.s32.totalorder %s48, %s51
      %p57 = scmp.eq.s32.totalorder %s24, 0
      %p58 = por %p56, %p57
      %p59 = scmp.ne.s32.totalorder %s48, %s51
      %p60 = scmp.eq.s32.totalorder %s29, 1
      %p61 = por %p59, %p60
      %p62 = scmp.ne.s32.totalorder %s51, %s52
      %p63 = scmp.eq.s32.totalorder %s29, 0
      %p64 = por %p62, %p63
      %p65 = scmp.ne.s32.totalorder %s51, %s52
      %p66 = scmp.eq.s32.totalorder %s30, 1
      %p67 = por %p65, %p66
      %p69 = scmp.ne.s32.totalorder %s52, %s68
      %p70 = scmp.eq.s32.totalorder %s30, 0
      %p71 = por %p69, %p70
      %s73 = sadd.s32 %s72, 1
      %p76 = scmp.eq.s32.totalorder %s24, 1
      %p77 = scmp.ne.s32.totalorder %s72, %s74
      %p78 = scmp.eq.s32.totalorder %s24, 0
      %p79 = por %p77, %p78
      %p80 = scmp.ne.s32.totalorder %s72, %s74
      %p81 = scmp.eq.s32.totalorder %s29, 1
      %p82 = por %p80, %p81
      %p83 = scmp.ne.s32.totalorder %s74, %s75
      %p84 = scmp.eq.s32.totalorder %s29, 0
      %p85 = por %p83, %p84
      %p86 = scmp.ne.s32.totalorder %s74, %s75
      %p87 = scmp.eq.s32.totalorder %s30, 1
      %p88 = por %p86, %p87
      %p90 = scmp.ne.s32.totalorder %s75, %s89
      %p91 = scmp.eq.s32.totalorder %s30, 0
      %p92 = por %p90, %p91
      %s94 = sadd.s32 %s93, 1
      %p97 = scmp.eq.s32.totalorder %s24, 1
      %p98 = scmp.ne.s32.totalorder %s93, %s95
      %p99 = scmp.eq.s32.totalorder %s24, 0
      %p100 = por %p98, %p99
      %p101 = scmp.ne.s32.totalorder %s93, %s95
      %p102 = scmp.eq.s32.totalorder %s29, 1
      %p103 = por %p101, %p102
      %p104 = scmp.ne.s32.totalorder %s95, %s96
      %p105 = scmp.eq.s32.totalorder %s29, 0
      %p106 = por %p104, %p105
      %p107 = scmp.ne.s32.totalorder %s95, %s96
      %p108 = scmp.eq.s32.totalorder %s30, 1
      %p109 = por %p107, %p108
      %p111 = scmp.ne.s32.totalorder %s96, %s110
      %p112 = scmp.eq.s32.totalorder %s30, 0
      %p113 = por %p111, %p112
      %s115 = sadd.s32 %s114, 1
      %p118 = scmp.eq.s32.totalorder %s24, 1
      %p119 = scmp.ne.s32.totalorder %s114, %s116
      %p120 = scmp.eq.s32.totalorder %s24, 0
      %p121 = por %p119, %p120
      %p122 = scmp.ne.s32.totalorder %s114, %s116
      %p123 = scmp.eq.s32.totalorder %s29, 1
      %p124 = por %p122, %p123
      %p125 = scmp.ne.s32.totalorder %s116, %s117
      %p126 = scmp.eq.s32.totalorder %s29, 0
      %p127 = por %p125, %p126
      %p128 = scmp.ne.s32.totalorder %s116, %s117
      %p129 = scmp.eq.s32.totalorder %s30, 1
      %p130 = por %p128, %p129
      %p132 = scmp.ne.s32.totalorder %s117, %s131
      %p133 = scmp.eq.s32.totalorder %s30, 0
      %p134 = por %p132, %p133
      %s136 = sadd.s32 %s135, 1
      %p139 = scmp.eq.s32.totalorder %s24, 1
      %p140 = scmp.ne.s32.totalorder %s135, %s137
      %p141 = scmp.eq.s32.totalorder %s24, 0
      %p142 = por %p140, %p141
      %p143 = scmp.ne.s32.totalorder %s135, %s137
      %p144 = scmp.eq.s32.totalorder %s29, 1
      %p145 = por %p143, %p144
      %p146 = scmp.ne.s32.totalorder %s137, %s138
      %p147 = scmp.eq.s32.totalorder %s29, 0
      %p148 = por %p146, %p147
      %p149 = scmp.ne.s32.totalorder %s137, %s138
      %p150 = scmp.eq.s32.totalorder %s30, 1
      %p151 = por %p149, %p150
      %p153 = scmp.ne.s32.totalorder %s138, %s152
      %p154 = scmp.eq.s32.totalorder %s30, 0
      %p155 = por %p153, %p154
      %s156 = ssub.s32 %s31, %s43
      %s157 = ssub.s32 %s32, %s39
      %s158 = sor.u32 %s156, %s157
      %p159 = scmp.eq.s32.totalorder %s158, 0
      %s161 = sadd.s32 %s160, 1
      %s162 = scalar_select %p159, %s160, %s161
      %p165 = pneg %p159
      %p166 = scmp.eq.s32.totalorder %s24, 1
      %p167 = por %p165, %p166
      %p168 = scmp.ne.s32.totalorder %s160, %s163
      %p169 = scmp.eq.s32.totalorder %s24, 0
      %p170 = por %p168, %p169
      %p171 = scmp.ne.s32.totalorder %s160, %s163
      %p172 = scmp.eq.s32.totalorder %s29, 1
      %p173 = por %p171, %p172
      %p174 = scmp.ne.s32.totalorder %s163, %s164
      %p175 = scmp.eq.s32.totalorder %s29, 0
      %p176 = por %p174, %p175
      %p177 = scmp.ne.s32.totalorder %s163, %s164
      %p178 = scmp.eq.s32.totalorder %s30, 1
      %p179 = por %p177, %p178
      %p181 = scmp.ne.s32.totalorder %s164, %s180
      %p182 = scmp.eq.s32.totalorder %s30, 0
      %p183 = por %p181, %p182
      %s184 = ssub.s32 %s31, %s43
      %s185 = ssub.s32 %s32, %s39
      %s186 = sor.u32 %s184, %s185
      %p187 = scmp.eq.s32.totalorder %s186, 0
      %s189 = sadd.s32 %s188, 1
      %s190 = scalar_select %p187, %s188, %s189
      %p193 = pneg %p187
      %p194 = scmp.eq.s32.totalorder %s24, 1
      %p195 = por %p193, %p194
      %p196 = scmp.ne.s32.totalorder %s188, %s191
      %p197 = scmp.eq.s32.totalorder %s24, 0
      %p198 = por %p196, %p197
      %p199 = scmp.ne.s32.totalorder %s188, %s191
      %p200 = scmp.eq.s32.totalorder %s29, 1
      %p201 = por %p199, %p200
      %p202 = scmp.ne.s32.totalorder %s191, %s192
      %p203 = scmp.eq.s32.totalorder %s29, 0
      %p204 = por %p202, %p203
      %p205 = scmp.ne.s32.totalorder %s191, %s192
      %p206 = scmp.eq.s32.totalorder %s30, 1
      %p207 = por %p205, %p206
      %p209 = scmp.ne.s32.totalorder %s192, %s208
      %p210 = scmp.eq.s32.totalorder %s30, 0
      %p211 = por %p209, %p210
      %s212 = ssub.s32 %s31, %s43
      %s213 = ssub.s32 %s32, %s39
      %s214 = sor.u32 %s212, %s213
      %p215 = scmp.eq.s32.totalorder %s214, 0
      %s217 = sadd.s32 %s216, 1
      %s218 = scalar_select %p215, %s216, %s217
      %p221 = pneg %p215
      %p222 = scmp.eq.s32.totalorder %s24, 1
      %p223 = por %p221, %p222
      %p224 = scmp.ne.s32.totalorder %s216, %s219
      %p225 = scmp.eq.s32.totalorder %s24, 0
      %p226 = por %p224, %p225
      %p227 = scmp.ne.s32.totalorder %s216, %s219
      %p228 = scmp.eq.s32.totalorder %s29, 1
      %p229 = por %p227, %p228
      %p230 = scmp.ne.s32.totalorder %s219, %s220
      %p231 = scmp.eq.s32.totalorder %s29, 0
      %p232 = por %p230, %p231
      %p233 = scmp.ne.s32.totalorder %s219, %s220
      %p234 = scmp.eq.s32.totalorder %s30, 1
      %p235 = por %p233, %p234
      %p237 = scmp.ne.s32.totalorder %s220, %s236
      %p238 = scmp.eq.s32.totalorder %s30, 0
      %p239 = por %p237, %p238
      %p240 = scmp.le.s32.totalorder 1, %s24
      %p241 = scmp.lt.s32.totalorder %s24, 3
      %p242 = pnand %p240, %p241
      %p243 = pneg %p242
      // Predicated region
      $region9: #{tpu_custom_call.1} parent=5 // pred_check
        _
      $region10: #{tpu_custom_call.1} parent=5 // pred_check_branch
        %245 = sbr.rel (%p242) target = $region12
      $region11: #{tpu_custom_call.1} parent=5 // pred_region
        %s246 = ssub.s32 %s24, 1
        // Predicated region
        $region13: #{tpu_custom_call.1} parent=11 // pred_check
          %p247 = pneg %p85
        $region14: #{tpu_custom_call.1} parent=11 // pred_check_branch
          %249 = sbr.rel (%p247) target = $region16
        $region15: #{tpu_custom_call.1} parent=11 // pred_region
          _
        $region16: #{tpu_custom_call.1} parent=11 // pred_fallthru
          _
        // Predicated region
        $region17: #{tpu_custom_call.1} parent=11 // pred_check
          %p250 = pneg %p106
        $region18: #{tpu_custom_call.1} parent=11 // pred_check_branch
          %252 = sbr.rel (%p250) target = $region20
        $region19: #{tpu_custom_call.1} parent=11 // pred_region
          _
        $region20: #{tpu_custom_call.1} parent=11 // pred_fallthru
          _
        // Predicated region
        $region21: #{tpu_custom_call.1} parent=11 // pred_check
          %p253 = pneg %p127
        $region22: #{tpu_custom_call.1} parent=11 // pred_check_branch
          %255 = sbr.rel (%p253) target = $region24
        $region23: #{tpu_custom_call.1} parent=11 // pred_region
          %s257 = ssub.s32 256, 256
          %258 = vsyncadd [#allocation6], %s257
          %s259 = sshll.u32 [#allocation5], 4
          %s260 = int_to_ptr.vmem [resolvable:$true] %s259
          %265 = dma.hbm_to_vmem [thread:$0]  %s3, 256, %s260, [#allocation6], 64, 64, 4
        $region24: #{tpu_custom_call.1} parent=11 // pred_fallthru
          _
        // Predicated region
        $region25: #{tpu_custom_call.1} parent=11 // pred_check
          %p266 = pneg %p148
        $region26: #{tpu_custom_call.1} parent=11 // pred_check_branch
          %268 = sbr.rel (%p266) target = $region28
        $region27: #{tpu_custom_call.1} parent=11 // pred_region
          _
        $region28: #{tpu_custom_call.1} parent=11 // pred_fallthru
          _
      $region12: #{tpu_custom_call.1} parent=5 // pred_fallthru
        _
      %p269 = scmp.lt.s32.totalorder %s24, 2
      // Predicated region
      $region29: #{tpu_custom_call.1} parent=5 // pred_check
        %p270 = pneg %p269
      $region30: #{tpu_custom_call.1} parent=5 // pred_check_branch
        %272 = sbr.rel (%p270) target = $region32
      $region31: #{tpu_custom_call.1} parent=5 // pred_region
        // Predicated region
        $region33: #{tpu_custom_call.1} parent=31 // pred_check
          %p273 = pneg %p58
        $region34: #{tpu_custom_call.1} parent=31 // pred_check_branch
          %275 = sbr.rel (%p273) target = $region36
        $region35: #{tpu_custom_call.1} parent=31 // pred_region
          %s276 = sand.u32 %s48, 1
          %s277 = scalar_lea.sflag [#allocation3], %s276
          %s278 = sand.u32 %s48, 1
          %s279 = smul.addr %s278, 8
          %s280 = scalar_lea.vmem [#allocation2], %s279
          %s282 = ssub.s32 128, 128
          %283 = vsyncadd %s277, %s282
          %s284 = sadd.s32 %s32, %s31
          %s285 = smul.addr %s284, 128
          %s286 = scalar_lea.hbm %s0, %s285
          %s288 = sshll.u32 %s280, 4
          %s289 = int_to_ptr.vmem [resolvable:$true] %s288
          %291 = dma.hbm_to_vmem [thread:$0]  %s286, 128, %s289, %s277
        $region36: #{tpu_custom_call.1} parent=31 // pred_fallthru
          _
      $region32: #{tpu_custom_call.1} parent=5 // pred_fallthru
        _
      %p292 = scmp.le.s32.totalorder 1, %s24
      %p293 = scmp.lt.s32.totalorder %s24, 3
      %p294 = pnand %p292, %p293
      %p295 = pneg %p294
      // Predicated region
      $region37: #{tpu_custom_call.1} parent=5 // pred_check
        _
      $region38: #{tpu_custom_call.1} parent=5 // pred_check_branch
        %297 = sbr.rel (%p294) target = $region40
      $region39: #{tpu_custom_call.1} parent=5 // pred_region
        %s298 = ssub.s32 %s24, 1
        %s299 = sand.u32 %s51, 1
        %s300 = scalar_lea.sflag [#allocation3], %s299
        %s301 = sand.u32 %s51, 1
        %s302 = smul.addr %s301, 8
        %s303 = scalar_lea.vmem [#allocation2], %s302
        // Predicated region
        $region41: #{tpu_custom_call.1} parent=39 // pred_check
          %p304 = pneg %p64
        $region42: #{tpu_custom_call.1} parent=39 // pred_check_branch
          %306 = sbr.rel (%p304) target = $region44
        $region43: #{tpu_custom_call.1} parent=39 // pred_region
          %307 = dma.done %s300, 128
        $region44: #{tpu_custom_call.1} parent=39 // pred_fallthru
          _
        // Predicated region
        $region45: #{tpu_custom_call.1} parent=39 // pred_check
          %p308 = pneg %p127
        $region46: #{tpu_custom_call.1} parent=39 // pred_check_branch
          %310 = sbr.rel (%p308) target = $region48
        $region47: #{tpu_custom_call.1} parent=39 // pred_region
          %311 = dma.done [#allocation6], 256
        $region48: #{tpu_custom_call.1} parent=39 // pred_fallthru
          _
        %s312 = sand.u32 %s51, 1
        %s313 = scalar_lea.sflag [#allocation3], %s312
        %s314 = sand.u32 %s51, 1
        %s315 = smul.addr %s314, 8
        %s316 = scalar_lea.vmem [#allocation2], %s315
        %p317 = pneg %p64
        %p318 = pneg %p61
        %p319 = pneg %p85
        %p320 = pneg %p82
        %p321 = pneg %p106
        %p322 = pneg %p103
        %p323 = pneg %p127
        %p324 = pneg %p124
        %p325 = pneg %p148
        %p326 = pneg %p145
        %p327 = pneg %p176
        %p328 = pneg %p173
        %s329 = sand.u32 %s163, 1
        %s330 = scalar_lea.sflag [#allocation4], %s329
        %s331 = sand.u32 %s163, 1
        %s332 = smul.addr %s331, 16
        %s333 = scalar_lea.vmem [#allocation7], %s332
        %p334 = pneg %p204
        %p335 = pneg %p201
        %s336 = sand.u32 %s29, 1
        %s337 = scalar_lea.sflag [#allocation9], %s336
        %s338 = sand.u32 %s191, 1
        %s339 = smul.addr %s338, 16
        %s340 = scalar_lea.vmem [#allocation8], %s339
        %p341 = pneg %p232
        %p342 = pneg %p229
        %s343 = sand.u32 %s29, 1
        %s344 = scalar_lea.sflag [#allocation9], %s343
        %s345 = sand.u32 %s219, 1
        %s346 = smul.addr %s345, 16
        %s347 = scalar_lea.vmem [#allocation10], %s346
        %v349 = vld [vmem:[%s303] sm:$0xff]
        %v350 = vld [vmem:[%s1] sm:$0x1]
        %v351 = vld [vmem:[%s2] sm:$0x1]
        %vm352 = vcmask 261120
        %v353 = vsel %vm352, %v349, 0.0
        %354 = vadd.xlane.f32.xlu0 %v353
        %v355 = vpop.xlane.xlu0 %354
        %v356 = vrcp.pop 32.0
        %v357 = vmul.f32 %v355, %v356
        %v358 = vsub.f32 %v349, %v357
        %v359 = vmul.f32 %v358, %v358
        %v360 = vsel %vm352, %v359, 0.0
        %361 = vadd.xlane.f32.xlu0 %v360
        %v362 = vpop.xlane.xlu0 %361
        %v363 = vmul.f32 %v362, %v356
        %v364 = vadd.f32 %v363, 1e-05
        %v365 = vrsqrt.pop %v364
        %v366 = vmul.f32 %v358, %v365
        %v368 = vlaneseq
        %v369 = vshrl.u32 %v368, 7
        %v370 = vsub.s32 0, %v369
        %v371 = vrot.slane %v350, %v370
        %v373 = vmul.f32 %v366, %v371
        %v375 = vlaneseq
        %v376 = vshrl.u32 %v375, 7
        %v377 = vsub.s32 0, %v376
        %v378 = vrot.slane %v351, %v377
        %v380 = vadd.f32 %v373, %v378
        %v381 = vpack.c.bf16 %v380, %v380
        %v382 = vld [vmem:[#allocation5] sm:$0xf]
        %v383 = vld [vmem:[#allocation5 + $0x4] sm:$0xf]
        %v384 = vld [vmem:[#allocation5 + $0x8] sm:$0xf]
        %v385 = vld [vmem:[#allocation5 + $0xc] sm:$0xf]
        %v386 = vld [vmem:[%s4] sm:$0x1]
        %v388 = vlaneseq
        %v389 = vshrl.u32 %v388, 7
        %v390 = vsub.s32 0, %v389
        %v391 = vrot.slane %v386, %v390
        %v397 = vunpack.c.l.b16 %v382
        %v398 = vunpack.c.l.b16 %v383
        %v399 = vunpack.c.l.b16 %v384
        %v400 = vunpack.c.l.b16 %v385
        %v401 = vpack.c.b16 %v398, %v397
        %v402 = vpack.c.b16 %v400, %v399
        %v406 = vsel %vm352, %v381, 0
        %408 = vmatprep.subr.bf16.mxu0 0
        %409 = vmatpush1.bf16.msra.mxu0 0
        %410 = vmatprep.subr.bf16.mxu0 0
        %411 = vmatpush1.bf16.msra.mxu0 0
        %412 = vmatprep.subr.bf16.mxu0 0
        %413 = vmatpush1.bf16.msra.mxu0 0
        %414 = vmatprep.subr.bf16.mxu0 0
        %415 = vmatpush1.bf16.msra.mxu0 0
        %416 = vmatprep.subr.bf16.mxu0 0
        %417 = vmatpush1.bf16.msra.mxu0 0
        %418 = vmatprep.subr.bf16.mxu0 0
        %419 = vmatpush1.bf16.msra.mxu0 0
        %420 = vmatprep.subr.bf16.mxu0 0
        %421 = vmatpush1.bf16.msra.mxu0 %v402
        %422 = vmatprep.subr.bf16.mxu0 0
        %423 = vmatpush1.bf16.msra.mxu0 %v401
        %424 = vmatprep.subr.bf16.mxu0 0
        %425 = vmatpush2.bf16.msra.mxu0 0
        %426 = vmatprep.subr.bf16.mxu0 0
        %427 = vmatpush2.bf16.msra.mxu0 0
        %428 = vmatprep.subr.bf16.mxu0 0
        %429 = vmatpush2.bf16.msra.mxu0 0
        %430 = vmatprep.subr.bf16.mxu0 0
        %431 = vmatpush2.bf16.msra.mxu0 0
        %432 = vmatprep.subr.bf16.mxu0 0
        %433 = vmatpush2.bf16.msra.mxu0 0
        %434 = vmatprep.subr.bf16.mxu0 0
        %435 = vmatpush2.bf16.msra.mxu0 0
        %436 = vmatprep.subr.bf16.mxu0 0
        %437 = vmatpush2.bf16.msra.mxu0 0
        %438 = vmatprep.subr.bf16.mxu0 0
        %439 = vmatpush2.bf16.msra.mxu0 0
        %440 = vmatprep.mubr.bf16.mxu0 0
        %441 = vmatmul.mubr.bf16.gmra.mxu0 %v406
        %v442 = vpop.f32.mrf.mxu0
        %v443 = vadd.f32 %v391, %v442
        %v444 = vpop.f32.mrf.mxu0
        %v445 = vpop.f32.mrf.mxu0
        %v446 = vpop.f32.mrf.mxu0
        %447 = vdwg.mxu0
        %v448 = vmul.f32 %v443, 0.35355338
        %450 = vrot.lane.b32.xlu0 %v448, 120
        %v451 = vpop.permute.xlu0 %450
        %452 = vrot.lane.b32.xlu0 %v448, 112
        %v453 = vpop.permute.xlu0 %452
        %454 = vrot.lane.b32.xlu0 %v448, 104
        %v455 = vpop.permute.xlu0 %454
        %456 = vrot.lane.b32.xlu0 %v448, 96
        %v457 = vpop.permute.xlu0 %456
        %458 = vrot.lane.b32.xlu0 %v451, 96
        %v459 = vpop.permute.xlu0 %458
        %460 = vrot.lane.b32.xlu0 %v453, 96
        %v461 = vpop.permute.xlu0 %460
        %462 = vrot.lane.b32.xlu0 %v455, 96
        %v463 = vpop.permute.xlu0 %462
        %v468 = vcombine.low %v457, %v461
        %v469 = vcombine.high %v457, %v461
        %v471 = vunpack.c.l.s4 1983009808
        %v472 = vunpack.c.0.s8 %v471
        %v473 = vlaneseq
        %v474 = vshrl.u32 %v473, 7
        %v475 = vsub.s32 %v472, %v474
        %v476 = vrot.slane %v468, %v475
        %v478 = vunpack.c.l.s4 1983009808
        %v479 = vunpack.c.0.s8 %v478
        %v480 = vlaneseq
        %v481 = vshrl.u32 %v480, 7
        %v482 = vsub.s32 %v479, %v481
        %v483 = vrot.slane %v469, %v482
        %v484 = vcombine.low %v459, %v463
        %v485 = vcombine.high %v459, %v463
        %v487 = vunpack.c.l.s4 1983009808
        %v488 = vunpack.c.0.s8 %v487
        %v489 = vlaneseq
        %v490 = vshrl.u32 %v489, 7
        %v491 = vsub.s32 %v488, %v490
        %v492 = vrot.slane %v484, %v491
        %v494 = vunpack.c.l.s4 1983009808
        %v495 = vunpack.c.0.s8 %v494
        %v496 = vlaneseq
        %v497 = vshrl.u32 %v496, 7
        %v498 = vsub.s32 %v495, %v497
        %v499 = vrot.slane %v485, %v498
        %v500 = vcombine.low %v476, %v492
        %v501 = vcombine.high %v476, %v492
        %v503 = vunpack.c.l.s4 1934713408
        %v504 = vunpack.c.0.s8 %v503
        %v505 = vlaneseq
        %v506 = vshrl.u32 %v505, 7
        %v507 = vsub.s32 %v504, %v506
        %v508 = vrot.slane %v500, %v507
        %v510 = vunpack.c.l.s4 1934713408
        %v511 = vunpack.c.0.s8 %v510
        %v512 = vlaneseq
        %v513 = vshrl.u32 %v512, 7
        %v514 = vsub.s32 %v511, %v513
        %v515 = vrot.slane %v501, %v514
        %v516 = vcombine.low %v483, %v499
        %v517 = vcombine.high %v483, %v499
        %v519 = vunpack.c.l.s4 1934713408
        %v520 = vunpack.c.0.s8 %v519
        %v521 = vlaneseq
        %v522 = vshrl.u32 %v521, 7
        %v523 = vsub.s32 %v520, %v522
        %v524 = vrot.slane %v516, %v523
        %v526 = vunpack.c.l.s4 1934713408
        %v527 = vunpack.c.0.s8 %v526
        %v528 = vlaneseq
        %v529 = vshrl.u32 %v528, 7
        %v530 = vsub.s32 %v527, %v529
        %v531 = vrot.slane %v517, %v530
        %v532 = vcombine.high %v508, 0.0
        %v533 = vcombine.high %v515, 0.0
        %v534 = vcombine.high %v524, 0.0
        %v535 = vcombine.high %v531, 0.0
        %v536 = vcombine.low %v508, %v515
        %v538 = vunpack.c.l.s4 1983009808
        %v539 = vunpack.c.0.s8 %v538
        %v540 = vlaneseq
        %v541 = vshrl.u32 %v540, 7
        %v542 = vsub.s32 %v539, %v541
        %v543 = vrot.slane %v536, %v542
        %v544 = vcombine.low %v532, %v533
        %v546 = vunpack.c.l.s4 1983009808
        %v547 = vunpack.c.0.s8 %v546
        %v548 = vlaneseq
        %v549 = vshrl.u32 %v548, 7
        %v550 = vsub.s32 %v547, %v549
        %v551 = vrot.slane %v544, %v550
        %v552 = vcombine.low %v524, %v531
        %v554 = vunpack.c.l.s4 1983009808
        %v555 = vunpack.c.0.s8 %v554
        %v556 = vlaneseq
        %v557 = vshrl.u32 %v556, 7
        %v558 = vsub.s32 %v555, %v557
        %v559 = vrot.slane %v552, %v558
        %v560 = vcombine.low %v534, %v535
        %v562 = vunpack.c.l.s4 1983009808
        %v563 = vunpack.c.0.s8 %v562
        %v564 = vlaneseq
        %v565 = vshrl.u32 %v564, 7
        %v566 = vsub.s32 %v563, %v565
        %v567 = vrot.slane %v560, %v566
        %v568 = vcombine.low %v543, %v551
        %v569 = vcombine.high %v543, %v551
        %v571 = vunpack.c.l.s4 1934713408
        %v572 = vunpack.c.0.s8 %v571
        %v573 = vlaneseq
        %v574 = vshrl.u32 %v573, 7
        %v575 = vsub.s32 %v572, %v574
        %v576 = vrot.slane %v568, %v575
        %v578 = vunpack.c.l.s4 1934713408
        %v579 = vunpack.c.0.s8 %v578
        %v580 = vlaneseq
        %v581 = vshrl.u32 %v580, 7
        %v582 = vsub.s32 %v579, %v581
        %v583 = vrot.slane %v569, %v582
        %v584 = vcombine.low %v559, %v567
        %v585 = vcombine.high %v559, %v567
        %v587 = vunpack.c.l.s4 1934713408
        %v588 = vunpack.c.0.s8 %v587
        %v589 = vlaneseq
        %v590 = vshrl.u32 %v589, 7
        %v591 = vsub.s32 %v588, %v590
        %v592 = vrot.slane %v584, %v591
        %v594 = vunpack.c.l.s4 1934713408
        %v595 = vunpack.c.0.s8 %v594
        %v596 = vlaneseq
        %v597 = vshrl.u32 %v596, 7
        %v598 = vsub.s32 %v595, %v597
        %v599 = vrot.slane %v585, %v598
        %v600 = vcombine.low %v576, %v592
        %v601 = vcombine.high %v576, %v592
        %v602 = vcombine.low %v583, %v599
        %v603 = vcombine.high %v583, %v599
        %v604 = vpack.c.bf16 %v600, %v600
        %v605 = vpack.c.bf16 %v601, %v601
        %v606 = vpack.c.bf16 %v602, %v602
        %v607 = vpack.c.bf16 %v603, %v603
        %vm608 = vcmask 60416
        %609 = vst.msk [vmem:[%s333] sm:$0xf] %vm608, %v604
        %610 = vst.msk [vmem:[%s333 + $0x4] sm:$0xf] %vm608, %v605
        %611 = vst.msk [vmem:[%s333 + $0x8] sm:$0xf] %vm608, %v606
        %612 = vst.msk [vmem:[%s333 + $0xc] sm:$0xf] %vm608, %v607
        %614 = vrot.lane.b32.xlu0 %v443, 120
        %v615 = vpop.permute.xlu0 %614
        %617 = vrot.lane.b32.xlu0 %v443, 112
        %v618 = vpop.permute.xlu0 %617
        %620 = vrot.lane.b32.xlu0 %v443, 104
        %v621 = vpop.permute.xlu0 %620
        %v623 = vcombine.low %v443, %v618
        %v624 = vcombine.high %v443, %v618
        %v626 = vunpack.c.l.s4 1983009808
        %v627 = vunpack.c.0.s8 %v626
        %v628 = vlaneseq
        %v629 = vshrl.u32 %v628, 7
        %v630 = vsub.s32 %v627, %v629
        %v631 = vrot.slane %v623, %v630
        %v633 = vunpack.c.l.s4 1983009808
        %v634 = vunpack.c.0.s8 %v633
        %v635 = vlaneseq
        %v636 = vshrl.u32 %v635, 7
        %v637 = vsub.s32 %v634, %v636
        %v638 = vrot.slane %v624, %v637
        %v639 = vcombine.low %v615, %v621
        %v640 = vcombine.high %v615, %v621
        %v642 = vunpack.c.l.s4 1983009808
        %v643 = vunpack.c.0.s8 %v642
        %v644 = vlaneseq
        %v645 = vshrl.u32 %v644, 7
        %v646 = vsub.s32 %v643, %v645
        %v647 = vrot.slane %v639, %v646
        %v649 = vunpack.c.l.s4 1983009808
        %v650 = vunpack.c.0.s8 %v649
        %v651 = vlaneseq
        %v652 = vshrl.u32 %v651, 7
        %v653 = vsub.s32 %v650, %v652
        %v654 = vrot.slane %v640, %v653
        %v655 = vcombine.low %v631, %v647
        %v656 = vcombine.high %v631, %v647
        %v658 = vunpack.c.l.s4 1934713408
        %v659 = vunpack.c.0.s8 %v658
        %v660 = vlaneseq
        %v661 = vshrl.u32 %v660, 7
        %v662 = vsub.s32 %v659, %v661
        %v663 = vrot.slane %v655, %v662
        %v665 = vunpack.c.l.s4 1934713408
        %v666 = vunpack.c.0.s8 %v665
        %v667 = vlaneseq
        %v668 = vshrl.u32 %v667, 7
        %v669 = vsub.s32 %v666, %v668
        %v670 = vrot.slane %v656, %v669
        %v671 = vcombine.low %v638, %v654
        %v672 = vcombine.high %v638, %v654
        %v674 = vunpack.c.l.s4 1934713408
        %v675 = vunpack.c.0.s8 %v674
        %v676 = vlaneseq
        %v677 = vshrl.u32 %v676, 7
        %v678 = vsub.s32 %v675, %v677
        %v679 = vrot.slane %v671, %v678
        %v681 = vunpack.c.l.s4 1934713408
        %v682 = vunpack.c.0.s8 %v681
        %v683 = vlaneseq
        %v684 = vshrl.u32 %v683, 7
        %v685 = vsub.s32 %v682, %v684
        %v686 = vrot.slane %v672, %v685
        %v687 = vcombine.high %v663, 0.0
        %v688 = vcombine.high %v670, 0.0
        %v689 = vcombine.high %v679, 0.0
        %v690 = vcombine.high %v686, 0.0
        %v691 = vcombine.low %v663, %v670
        %v693 = vunpack.c.l.s4 1983009808
        %v694 = vunpack.c.0.s8 %v693
        %v695 = vlaneseq
        %v696 = vshrl.u32 %v695, 7
        %v697 = vsub.s32 %v694, %v696
        %v698 = vrot.slane %v691, %v697
        %v699 = vcombine.low %v687, %v688
        %v701 = vunpack.c.l.s4 1983009808
        %v702 = vunpack.c.0.s8 %v701
        %v703 = vlaneseq
        %v704 = vshrl.u32 %v703, 7
        %v705 = vsub.s32 %v702, %v704
        %v706 = vrot.slane %v699, %v705
        %v707 = vcombine.low %v679, %v686
        %v709 = vunpack.c.l.s4 1983009808
        %v710 = vunpack.c.0.s8 %v709
        %v711 = vlaneseq
        %v712 = vshrl.u32 %v711, 7
        %v713 = vsub.s32 %v710, %v712
        %v714 = vrot.slane %v707, %v713
        %v715 = vcombine.low %v689, %v690
        %v717 = vunpack.c.l.s4 1983009808
        %v718 = vunpack.c.0.s8 %v717
        %v719 = vlaneseq
        %v720 = vshrl.u32 %v719, 7
        %v721 = vsub.s32 %v718, %v720
        %v722 = vrot.slane %v715, %v721
        %v723 = vcombine.low %v698, %v706
        %v724 = vcombine.high %v698, %v706
        %v726 = vunpack.c.l.s4 1934713408
        %v727 = vunpack.c.0.s8 %v726
        %v728 = vlaneseq
        %v729 = vshrl.u32 %v728, 7
        %v730 = vsub.s32 %v727, %v729
        %v731 = vrot.slane %v723, %v730
        %v733 = vunpack.c.l.s4 1934713408
        %v734 = vunpack.c.0.s8 %v733
        %v735 = vlaneseq
        %v736 = vshrl.u32 %v735, 7
        %v737 = vsub.s32 %v734, %v736
        %v738 = vrot.slane %v724, %v737
        %v739 = vcombine.low %v714, %v722
        %v740 = vcombine.high %v714, %v722
        %v742 = vunpack.c.l.s4 1934713408
        %v743 = vunpack.c.0.s8 %v742
        %v744 = vlaneseq
        %v745 = vshrl.u32 %v744, 7
        %v746 = vsub.s32 %v743, %v745
        %v747 = vrot.slane %v739, %v746
        %v749 = vunpack.c.l.s4 1934713408
        %v750 = vunpack.c.0.s8 %v749
        %v751 = vlaneseq
        %v752 = vshrl.u32 %v751, 7
        %v753 = vsub.s32 %v750, %v752
        %v754 = vrot.slane %v740, %v753
        %v755 = vcombine.low %v731, %v747
        %v756 = vcombine.high %v731, %v747
        %v757 = vcombine.low %v738, %v754
        %v758 = vcombine.high %v738, %v754
        %v759 = vpack.c.bf16 %v755, %v755
        %v760 = vpack.c.bf16 %v756, %v756
        %v761 = vpack.c.bf16 %v757, %v757
        %v762 = vpack.c.bf16 %v758, %v758
        %763 = vst.msk [vmem:[%s340] sm:$0xf] %vm608, %v759
        %764 = vst.msk [vmem:[%s340 + $0x4] sm:$0xf] %vm608, %v760
        %765 = vst.msk [vmem:[%s340 + $0x8] sm:$0xf] %vm608, %v761
        %766 = vst.msk [vmem:[%s340 + $0xc] sm:$0xf] %vm608, %v762
        %767 = vrot.lane.b32.xlu0 %v443, 64
        %v768 = vpop.permute.xlu0 %767
        %769 = vrot.lane.b32.xlu0 %v615, 64
        %v770 = vpop.permute.xlu0 %769
        %771 = vrot.lane.b32.xlu0 %v618, 64
        %v772 = vpop.permute.xlu0 %771
        %773 = vrot.lane.b32.xlu0 %v621, 64
        %v774 = vpop.permute.xlu0 %773
        %v779 = vcombine.low %v768, %v772
        %v780 = vcombine.high %v768, %v772
        %v782 = vunpack.c.l.s4 1983009808
        %v783 = vunpack.c.0.s8 %v782
        %v784 = vlaneseq
        %v785 = vshrl.u32 %v784, 7
        %v786 = vsub.s32 %v783, %v785
        %v787 = vrot.slane %v779, %v786
        %v789 = vunpack.c.l.s4 1983009808
        %v790 = vunpack.c.0.s8 %v789
        %v791 = vlaneseq
        %v792 = vshrl.u32 %v791, 7
        %v793 = vsub.s32 %v790, %v792
        %v794 = vrot.slane %v780, %v793
        %v795 = vcombine.low %v770, %v774
        %v796 = vcombine.high %v770, %v774
        %v798 = vunpack.c.l.s4 1983009808
        %v799 = vunpack.c.0.s8 %v798
        %v800 = vlaneseq
        %v801 = vshrl.u32 %v800, 7
        %v802 = vsub.s32 %v799, %v801
        %v803 = vrot.slane %v795, %v802
        %v805 = vunpack.c.l.s4 1983009808
        %v806 = vunpack.c.0.s8 %v805
        %v807 = vlaneseq
        %v808 = vshrl.u32 %v807, 7
        %v809 = vsub.s32 %v806, %v808
        %v810 = vrot.slane %v796, %v809
        %v811 = vcombine.low %v787, %v803
        %v812 = vcombine.high %v787, %v803
        %v814 = vunpack.c.l.s4 1934713408
        %v815 = vunpack.c.0.s8 %v814
        %v816 = vlaneseq
        %v817 = vshrl.u32 %v816, 7
        %v818 = vsub.s32 %v815, %v817
        %v819 = vrot.slane %v811, %v818
        %v821 = vunpack.c.l.s4 1934713408
        %v822 = vunpack.c.0.s8 %v821
        %v823 = vlaneseq
        %v824 = vshrl.u32 %v823, 7
        %v825 = vsub.s32 %v822, %v824
        %v826 = vrot.slane %v812, %v825
        %v827 = vcombine.low %v794, %v810
        %v828 = vcombine.high %v794, %v810
        %v830 = vunpack.c.l.s4 1934713408
        %v831 = vunpack.c.0.s8 %v830
        %v832 = vlaneseq
        %v833 = vshrl.u32 %v832, 7
        %v834 = vsub.s32 %v831, %v833
        %v835 = vrot.slane %v827, %v834
        %v837 = vunpack.c.l.s4 1934713408
        %v838 = vunpack.c.0.s8 %v837
        %v839 = vlaneseq
        %v840 = vshrl.u32 %v839, 7
        %v841 = vsub.s32 %v838, %v840
        %v842 = vrot.slane %v828, %v841
        %v843 = vcombine.high %v819, 0.0
        %v844 = vcombine.high %v826, 0.0
        %v845 = vcombine.high %v835, 0.0
        %v846 = vcombine.high %v842, 0.0
        %v847 = vcombine.low %v819, %v826
        %v849 = vunpack.c.l.s4 1983009808
        %v850 = vunpack.c.0.s8 %v849
        %v851 = vlaneseq
        %v852 = vshrl.u32 %v851, 7
        %v853 = vsub.s32 %v850, %v852
        %v854 = vrot.slane %v847, %v853
        %v855 = vcombine.low %v843, %v844
        %v857 = vunpack.c.l.s4 1983009808
        %v858 = vunpack.c.0.s8 %v857
        %v859 = vlaneseq
        %v860 = vshrl.u32 %v859, 7
        %v861 = vsub.s32 %v858, %v860
        %v862 = vrot.slane %v855, %v861
        %v863 = vcombine.low %v835, %v842
        %v865 = vunpack.c.l.s4 1983009808
        %v866 = vunpack.c.0.s8 %v865
        %v867 = vlaneseq
        %v868 = vshrl.u32 %v867, 7
        %v869 = vsub.s32 %v866, %v868
        %v870 = vrot.slane %v863, %v869
        %v871 = vcombine.low %v845, %v846
        %v873 = vunpack.c.l.s4 1983009808
        %v874 = vunpack.c.0.s8 %v873
        %v875 = vlaneseq
        %v876 = vshrl.u32 %v875, 7
        %v877 = vsub.s32 %v874, %v876
        %v878 = vrot.slane %v871, %v877
        %v879 = vcombine.low %v854, %v862
        %v880 = vcombine.high %v854, %v862
        %v882 = vunpack.c.l.s4 1934713408
        %v883 = vunpack.c.0.s8 %v882
        %v884 = vlaneseq
        %v885 = vshrl.u32 %v884, 7
        %v886 = vsub.s32 %v883, %v885
        %v887 = vrot.slane %v879, %v886
        %v889 = vunpack.c.l.s4 1934713408
        %v890 = vunpack.c.0.s8 %v889
        %v891 = vlaneseq
        %v892 = vshrl.u32 %v891, 7
        %v893 = vsub.s32 %v890, %v892
        %v894 = vrot.slane %v880, %v893
        %v895 = vcombine.low %v870, %v878
        %v896 = vcombine.high %v870, %v878
        %v898 = vunpack.c.l.s4 1934713408
        %v899 = vunpack.c.0.s8 %v898
        %v900 = vlaneseq
        %v901 = vshrl.u32 %v900, 7
        %v902 = vsub.s32 %v899, %v901
        %v903 = vrot.slane %v895, %v902
        %v905 = vunpack.c.l.s4 1934713408
        %v906 = vunpack.c.0.s8 %v905
        %v907 = vlaneseq
        %v908 = vshrl.u32 %v907, 7
        %v909 = vsub.s32 %v906, %v908
        %v910 = vrot.slane %v896, %v909
        %v911 = vcombine.low %v887, %v903
        %v912 = vcombine.high %v887, %v903
        %v913 = vcombine.low %v894, %v910
        %v914 = vcombine.high %v894, %v910
        %v915 = vpack.c.bf16 %v911, %v911
        %v916 = vpack.c.bf16 %v912, %v912
        %v917 = vpack.c.bf16 %v913, %v913
        %v918 = vpack.c.bf16 %v914, %v914
        %919 = vst.msk [vmem:[%s347] sm:$0xf] %vm608, %v915
        %920 = vst.msk [vmem:[%s347 + $0x4] sm:$0xf] %vm608, %v916
        %921 = vst.msk [vmem:[%s347 + $0x8] sm:$0xf] %vm608, %v917
        %922 = vst.msk [vmem:[%s347 + $0xc] sm:$0xf] %vm608, %v918
        %s923 = sand.u32 %s163, 1
        %s924 = scalar_lea.sflag [#allocation4], %s923
        %s925 = sand.u32 %s163, 1
        %s926 = smul.addr %s925, 16
        %s927 = scalar_lea.vmem [#allocation7], %s926
        %s928 = sand.u32 %s29, 1
        %s929 = scalar_lea.sflag [#allocation9], %s928
        %s930 = sand.u32 %s191, 1
        %s931 = smul.addr %s930, 16
        %s932 = scalar_lea.vmem [#allocation8], %s931
        %s933 = sand.u32 %s29, 1
        %s934 = scalar_lea.sflag [#allocation9], %s933
        %s935 = sand.u32 %s219, 1
        %s936 = smul.addr %s935, 16
        %s937 = scalar_lea.vmem [#allocation10], %s936
        // Predicated region
        $region49: #{tpu_custom_call.1} parent=39 // pred_check
          %p938 = pneg %p173
        $region50: #{tpu_custom_call.1} parent=39 // pred_check_branch
          %940 = sbr.rel (%p938) target = $region52
        $region51: #{tpu_custom_call.1} parent=39 // pred_region
          %s942 = ssub.s32 256, 256
          %943 = vsyncadd %s924, %s942
          %s944 = smul.addr %s33, 4
          %s945 = sadd.s32 %s34, %s944
          %s946 = smul.addr %s945, 64
          %s947 = scalar_lea.hbm %s5, %s946
          %s948 = sshll.u32 %s927, 4
          %s949 = int_to_ptr.vmem [resolvable:$true] %s948
          %954 = dma.vmem_to_hbm [thread:$0]  %s949, 256, %s947, %s924, 64, 64, 4
        $region52: #{tpu_custom_call.1} parent=39 // pred_fallthru
          _
        // Predicated region
        $region53: #{tpu_custom_call.1} parent=39 // pred_check
          %p955 = pneg %p201
        $region54: #{tpu_custom_call.1} parent=39 // pred_check_branch
          %957 = sbr.rel (%p955) target = $region56
        $region55: #{tpu_custom_call.1} parent=39 // pred_region
          %s959 = ssub.s32 256, 256
          %960 = vsyncadd %s929, %s959
          %s961 = smul.addr %s33, 4
          %s962 = sadd.s32 %s34, %s961
          %s963 = smul.addr %s962, 64
          %s964 = scalar_lea.hbm %s6, %s963
          %s965 = sshll.u32 %s932, 4
          %s966 = int_to_ptr.vmem [resolvable:$true] %s965
          %971 = dma.vmem_to_hbm [thread:$0]  %s966, 256, %s964, %s929, 64, 64, 4
        $region56: #{tpu_custom_call.1} parent=39 // pred_fallthru
          _
        // Predicated region
        $region57: #{tpu_custom_call.1} parent=39 // pred_check
          %p972 = pneg %p229
        $region58: #{tpu_custom_call.1} parent=39 // pred_check_branch
          %974 = sbr.rel (%p972) target = $region60
        $region59: #{tpu_custom_call.1} parent=39 // pred_region
          %s976 = ssub.s32 256, 256
          %977 = vsyncadd %s934, %s976
          %s978 = smul.addr %s33, 4
          %s979 = sadd.s32 %s34, %s978
          %s980 = smul.addr %s979, 64
          %s981 = scalar_lea.hbm %s7, %s980
          %s982 = sshll.u32 %s937, 4
          %s983 = int_to_ptr.vmem [resolvable:$true] %s982
          %988 = dma.vmem_to_hbm [thread:$0]  %s983, 256, %s981, %s934, 64, 64, 4
        $region60: #{tpu_custom_call.1} parent=39 // pred_fallthru
          _
      $region40: #{tpu_custom_call.1} parent=5 // pred_fallthru
        _
      %p989 = scmp.le.s32.totalorder 2, %s24
      // Predicated region
      $region61: #{tpu_custom_call.1} parent=5 // pred_check
        %p990 = pneg %p989
      $region62: #{tpu_custom_call.1} parent=5 // pred_check_branch
        %992 = sbr.rel (%p990) target = $region64
      $region63: #{tpu_custom_call.1} parent=5 // pred_region
        %s993 = ssub.s32 %s24, 2
        // Predicated region
        $region65: #{tpu_custom_call.1} parent=63 // pred_check
          %p994 = pneg %p179
        $region66: #{tpu_custom_call.1} parent=63 // pred_check_branch
          %996 = sbr.rel (%p994) target = $region68
        $region67: #{tpu_custom_call.1} parent=63 // pred_region
          %s997 = sand.u32 %s164, 1
          %s998 = scalar_lea.sflag [#allocation4], %s997
          %s999 = sand.u32 %s164, 1
          %s1000 = smul.addr %s999, 16
          %s1001 = scalar_lea.vmem [#allocation7], %s1000
          %1002 = dma.done %s998, 256
        $region68: #{tpu_custom_call.1} parent=63 // pred_fallthru
          _
        // Predicated region
        $region69: #{tpu_custom_call.1} parent=63 // pred_check
          %p1003 = pneg %p207
        $region70: #{tpu_custom_call.1} parent=63 // pred_check_branch
          %1005 = sbr.rel (%p1003) target = $region72
        $region71: #{tpu_custom_call.1} parent=63 // pred_region
          %s1006 = sand.u32 %s30, 1
          %s1007 = scalar_lea.sflag [#allocation9], %s1006
          %s1008 = sand.u32 %s192, 1
          %s1009 = smul.addr %s1008, 16
          %s1010 = scalar_lea.vmem [#allocation8], %s1009
          %1011 = dma.done %s1007, 256
        $region72: #{tpu_custom_call.1} parent=63 // pred_fallthru
          _
        // Predicated region
        $region73: #{tpu_custom_call.1} parent=63 // pred_check
          %p1012 = pneg %p235
        $region74: #{tpu_custom_call.1} parent=63 // pred_check_branch
          %1014 = sbr.rel (%p1012) target = $region76
        $region75: #{tpu_custom_call.1} parent=63 // pred_region
          %s1015 = sand.u32 %s30, 1
          %s1016 = scalar_lea.sflag [#allocation9], %s1015
          %s1017 = sand.u32 %s220, 1
          %s1018 = smul.addr %s1017, 16
          %s1019 = scalar_lea.vmem [#allocation10], %s1018
          %1020 = dma.done %s1016, 256
        $region76: #{tpu_custom_call.1} parent=63 // pred_fallthru
          _
      $region64: #{tpu_custom_call.1} parent=5 // pred_fallthru
        _
    $region6: #{tpu_custom_call.1} parent=1 // loop_footer
      %s28 = sadd.s32 1, %s24
    $region7: #{tpu_custom_call.1} parent=1 // loop_footer_branch
      %23 = sbr.rel target = $region3
    $region8: #{tpu_custom_call.1} parent=1 // loop_exit
      _
    %1021 = vsyncpa [#allocation3], 1
    %s1022 = scalar_lea.sflag [#allocation3], 1
    %1023 = vsyncpa %s1022, 1
    %1024 = vsyncpa [#allocation6], 1
    %1025 = vsyncpa [#allocation4], 1
    %s1026 = scalar_lea.sflag [#allocation4], 1
    %1027 = vsyncpa %s1026, 1
    %1028 = vsyncpa [#allocation9], 1
    %s1029 = scalar_lea.sflag [#allocation9], 1
    %1030 = vsyncpa %s1029, 1

</llo_original>
